<compile_context>
chip_gen: v5e
topology: v5e:2x2
jax: 0.10.0
libtpu: 0.0.40
codegen_flags: <defaults>
</compile_context>

<pallas_src>
import jax
import jax.numpy as jnp
from jax.experimental import pallas as pl
from jax.experimental.pallas import tpu as pltpu


_LANE = 128


def _relu_kernel(x_ref, o_ref):
    # Elementwise ReLU on the current VMEM tile (pure VPU work).
    o_ref[...] = jnp.maximum(x_ref[...], 0)


def _sublane_multiple(dtype) -> int:
    """Minimum row-tile multiple for the dtype's packed sublane layout."""
    bits = jnp.dtype(dtype).itemsize * 8
    if bits >= 32:
        return 8
    if bits == 16:
        return 16
    return 32


def _chip_config():
    """(block_bytes, vmem_limit_bytes_or_None, min_grid_steps) per TPU gen."""
    try:
        kind = jax.devices()[0].device_kind.lower().replace(" ", "")
    except Exception:  # pragma: no cover - defensive
        kind = ""
    if "v7" in kind or "tpu7" in kind:
        # v7x: 2 TCs, ~3.2 TB/s HBM, 64 MiB physical / 32 MiB default scoped
        # VMEM.  6 MiB blocks -> ~24 MiB live (2 bufs x in+out); raise the
        # scoped limit to 48 MiB to allow it while keeping headroom.
        return 6 * 1024 * 1024, 48 << 20, 4
    if "v6" in kind:
        # v6e: 1 TC, 32 MiB default scoped VMEM -> 4 MiB blocks (16 MiB live).
        return 4 * 1024 * 1024, None, 2
    # v5e / unknown: conservative, fits the 16 MiB default scoped VMEM.
    return 2 * 1024 * 1024, None, 2


def _relu_2d(x2d, block_bytes, vmem_limit_bytes, min_grid_steps):
    """Elementwise ReLU over a 2D slab: rows tiled, full-width columns."""
    rows, cols = x2d.shape
    itemsize = jnp.dtype(x2d.dtype).itemsize
    sub = _sublane_multiple(x2d.dtype)

    # Row tile sized so one block is ~block_bytes, rounded down to the dtype's
    # sublane multiple (never below it).
    tile_rows = max(sub, (block_bytes // max(1, cols * itemsize)) // sub * sub)
    # Keep at least `min_grid_steps` grid steps so (a) both v7x TensorCores
    # get work from the "parallel" axis and (b) the DMA pipeline overlaps.
    cap = max(sub, (pl.cdiv(rows, min_grid_steps) // sub) * sub)
    tile_rows = min(tile_rows, cap, rows)  # == rows (full extent) is legal too

    grid = (pl.cdiv(rows, tile_rows),)  # ragged last block is masked by Pallas

    cp_kwargs = dict(dimension_semantics=("parallel",))
    if vmem_limit_bytes is not None:
        cp_kwargs["vmem_limit_bytes"] = vmem_limit_bytes

    return pl.pallas_call(
        _relu_kernel,
        out_shape=jax.ShapeDtypeStruct((rows, cols), x2d.dtype),
        grid_spec=pltpu.PrefetchScalarGridSpec(
            num_scalar_prefetch=0,
            grid=grid,
            in_specs=[pl.BlockSpec((tile_rows, cols), lambda i: (i, 0))],
            out_specs=pl.BlockSpec((tile_rows, cols), lambda i: (i, 0)),
        ),
        compiler_params=pltpu.CompilerParams(**cp_kwargs),
    )(x2d)


def temporary_relu(x, redirected: bool = True):
    """Forward pass of TemporaryRelu.

    Args:
      x: NCHW array (any shape works; it is treated elementwise).
      redirected: whether parent.redirected is set.  Forward is identical for
        both branches (max(x, 0)); the flag only matters for backward.
    """
    # TODO(synk): RedirectedReLU's custom *backward* (gradient redirection for
    # dead units when redirected=True) is not reproduced here; only the
    # forward pass is implemented.  Wrap in jax.custom_vjp for training use.
    del redirected  # forward semantics are the same in both branches

    orig_shape = x.shape
    total = x.size
    if total == 0:
        return x

    itemsize = jnp.dtype(x.dtype).itemsize
    block_bytes, vmem_limit, min_steps = _chip_config()
    sub = _sublane_multiple(x.dtype)

    # 1) Preferred: padding-free, lane-dense factoring (cols = multiple of 128).
    #    Prefer the widest cols that still leaves >= 8 rows (denser layout).
    best_cols = None
    for cols in (2048, 1024, 512, 256, 128):
        if total % cols:
            continue
        if best_cols is None:
            best_cols = cols
        if total // cols >= 8:
            best_cols = cols
            break
    if best_cols is not None:
        y2d = _relu_2d(x.reshape(total // best_cols, best_cols),
                       block_bytes, vmem_limit, min_steps)
        return y2d.reshape(orig_shape)

    # 2) Still padding-free: collapse trailing dims into the widest lane-dense
    #    column width (>= 128) that fits one block; only the last lane-vreg of
    #    each row is partially masked.  Never accept a sub-128 (lane-sparse)
    #    column width.
    best_cols = None
    for k in range(1, len(orig_shape)):
        cols = 1
        for d in orig_shape[k:]:
            cols *= int(d)
        if cols < _LANE:
            continue
        if cols * itemsize * sub > block_bytes:
            continue
        if best_cols is None or cols > best_cols:
            best_cols = cols
    if best_cols is not None:
        y2d = _relu_2d(x.reshape(total // best_cols, best_cols),
                       block_bytes, vmem_limit, min_steps)
        return y2d.reshape(orig_shape)

    # 3) Pathological / tiny shapes: a single fused XLA elementwise pass is
    #    already bandwidth-optimal (and beats pad -> kernel -> slice by ~3x).
    return jnp.maximum(x, 0)


if __name__ == "__main__":
    key = jax.random.PRNGKey(0)

    # NCHW input, small shape consistent with a conv activation.
    x = jax.random.normal(key, (2, 4, 16, 16), dtype=jnp.float32)

    y = temporary_relu(x, redirected=True)
    jax.block_until_ready(y)

    y_ref = jnp.maximum(x, 0.0)
    assert y.shape == x.shape and y.dtype == x.dtype
    assert bool(jnp.allclose(y, y_ref)), "mismatch vs reference ReLU"

    # Non-redirected branch (standard ReLU) — identical forward.
    y2 = temporary_relu(x, redirected=False)
    jax.block_until_ready(y2)
    assert bool(jnp.allclose(y2, y_ref)), "mismatch vs reference ReLU"

    # Exercise path 2 (total not a multiple of 128; trailing dims collapsed
    # into a lane-dense >=128-wide slab).
    x_odd = jax.random.normal(jax.random.PRNGKey(1), (3, 5, 7, 11), dtype=jnp.float32)
    y_odd = temporary_relu(x_odd)
    jax.block_until_ready(y_odd)
    assert bool(jnp.allclose(y_odd, jnp.maximum(x_odd, 0.0))), "path-2 mismatch"

    # Exercise path 3 (tiny lane-sparse shape -> plain fused elementwise).
    x_tiny = jax.random.normal(jax.random.PRNGKey(2), (5, 3), dtype=jnp.float32)
    y_tiny = temporary_relu(x_tiny)
    jax.block_until_ready(y_tiny)
    assert bool(jnp.allclose(y_tiny, jnp.maximum(x_tiny, 0.0))), "path-3 mismatch"

    # Exercise a sub-32-bit dtype (bf16 sublane minimum handling).
    x_bf16 = x.astype(jnp.bfloat16)
    y_bf16 = temporary_relu(x_bf16)
    jax.block_until_ready(y_bf16)
    assert y_bf16.dtype == jnp.bfloat16
    assert bool(jnp.allclose(y_bf16.astype(jnp.float32),
                             jnp.maximum(x_bf16, 0).astype(jnp.float32))), "bf16 mismatch"

    print("KERNEL_OK")
</pallas_src>

<mosaic_0001>
module attributes {stable_mosaic.version = 11 : i64} {
  func.func @_relu_kernel(%arg0: i32, %arg1: memref<8x256xf32, #tpu.memory_space<vmem>>, %arg2: memref<8x256xf32, #tpu.memory_space<vmem>>) attributes {dimension_semantics = [#tpu.dimension_semantics<parallel>], iteration_bounds = array<i64: 1>, scalar_prefetch = 0 : i64, scratch_operands = 0 : i64, tpu.core_type = #tpu.core_type<tc>, window_params = [{transform_indices = @transform_0, window_bounds = array<i64: 8, 256>}, {transform_indices = @transform_1, window_bounds = array<i64: 8, 256>}]} {
    %c0 = arith.constant 0 : index
    %c0_0 = arith.constant 0 : index
    %0 = vector.load %arg1[%c0, %c0_0] : memref<8x256xf32, #tpu.memory_space<vmem>>, vector<8x256xf32>
    %cst = arith.constant 0.000000e+00 : f32
    %1 = vector.broadcast %cst : f32 to vector<8x256xf32>
    %2 = arith.maximumf %0, %1 : vector<8x256xf32>
    %c0_1 = arith.constant 0 : index
    %c0_2 = arith.constant 0 : index
    %3 = vector.load %arg2[%c0_1, %c0_2] : memref<8x256xf32, #tpu.memory_space<vmem>>, vector<8x256xf32>
    tpu.vector_store %arg2[%c0_1, %c0_2], %2 {strides = array<i32>} : memref<8x256xf32, #tpu.memory_space<vmem>>, vector<8x256xf32>,
    return
  }
  func.func @transform_0(%arg0: i32) -> (i32, i32) {
    %c0_i32 = arith.constant 0 : i32
    %c0_i32_0 = arith.constant 0 : i32
    return %arg0, %c0_i32 : i32, i32
  }
  func.func @transform_1(%arg0: i32) -> (i32, i32) {
    %c0_i32 = arith.constant 0 : i32
    %c0_i32_0 = arith.constant 0 : i32
    return %arg0, %c0_i32 : i32, i32
  }
}

</mosaic_0001>

<llo_original>
// kernel: tpu_custom_call.1
$region0: #{tpu_custom_call.1}
  #allocation0 [shape = 'u32[]', space=smem, size = 0x4, offset = 0x4, fixed_abs, tag = 'smem constant byte address 0x4 - core index']
  #allocation1 [shape = 'u32[72,128]{1,0:T(1,128)}', space=vmem, size = 0x9000, scoped, tag = 'internal scratch']
  %s0 = inlined_call_operand.hbm [shape: f32[8,256], index: 0, kind: input, shape index: {}]
  %s1 = inlined_call_operand.hbm [shape: f32[8,256], index: 1, kind: output, shape index: {}]
  %s2 = sld [smem:[#allocation0]]
  $region18: #{tpu_custom_call.1} parent=0
    _
  %s4 = ssub.s32 1, %s2
  %s5 = scalar_select 0, %s4, %s2
  $region1: #{tpu_custom_call.1} parent=0
    #allocation2 [shape = 'u8[8192]{0}', space=vmem, size = 0x2000, scoped, tag = 'input window, operand 0, single buffered']
    #allocation3 [shape = 's32[1]{0}', space=sflag, size = 0x4, scoped, tag = 'scoped memory for tpu_custom_call.1']
    #allocation4 [shape = 's32[1]{0}', space=sflag, size = 0x4, scoped, tag = 'scoped memory for tpu_custom_call.1']
    #allocation5 [shape = 'u8[8192]{0}', space=vmem, size = 0x2000, scoped, tag = 'output window, operand 0, single buffered']
    %6 = vsyncpa [#allocation3], 0
    %7 = vsyncpa [#allocation4], 0
    // Predicated region
    $region2: #{tpu_custom_call.1} parent=1 // pred_check
      _
    $region3: #{tpu_custom_call.1} parent=1 // pred_check_branch
      %9 = sbr.rel (0) target = $region5
    $region4: #{tpu_custom_call.1} parent=1 // pred_region
      %11 = vsyncadd [#allocation3], 0
      %s13 = sshll.u32 %s0, 4
      %s14 = int_to_ptr.hbm [resolvable:$true] %s13
      %s15 = sshll.u32 [#allocation2], 4
      %s16 = int_to_ptr.vmem [resolvable:$true] %s15
      %18 = dma.hbm_to_vmem [thread:$0]  %s14, 256, %s16, [#allocation3]
    $region5: #{tpu_custom_call.1} parent=1 // pred_fallthru
      _
    // Predicated region
    $region6: #{tpu_custom_call.1} parent=1 // pred_check
      _
    $region7: #{tpu_custom_call.1} parent=1 // pred_check_branch
      %20 = sbr.rel (0) target = $region9
    $region8: #{tpu_custom_call.1} parent=1 // pred_region
      %22 = dma.done [#allocation3], 256
    $region9: #{tpu_custom_call.1} parent=1 // pred_fallthru
      _
    %v23 = vld [vmem:[#allocation2] sm:$0xff]
    %v24 = vld [vmem:[#allocation2 + $0x8] sm:$0xff]
    %v25 = vmax.f32 %v23, 0.0
    %v26 = vmax.f32 %v24, 0.0
    %27 = vst [vmem:[#allocation5] sm:$0xff] %v25
    %28 = vst [vmem:[#allocation5 + $0x8] sm:$0xff] %v26
    // Predicated region
    $region10: #{tpu_custom_call.1} parent=1 // pred_check
      _
    $region11: #{tpu_custom_call.1} parent=1 // pred_check_branch
      %30 = sbr.rel (0) target = $region13
    $region12: #{tpu_custom_call.1} parent=1 // pred_region
      %32 = vsyncadd [#allocation4], 0
      %s34 = sshll.u32 [#allocation5], 4
      %s35 = int_to_ptr.vmem [resolvable:$true] %s34
      %s36 = sshll.u32 %s1, 4
      %s37 = int_to_ptr.hbm [resolvable:$true] %s36
      %39 = dma.vmem_to_hbm [thread:$0]  %s35, 256, %s37, [#allocation4]
    $region13: #{tpu_custom_call.1} parent=1 // pred_fallthru
      _
    // Predicated region
    $region14: #{tpu_custom_call.1} parent=1 // pred_check
      _
    $region15: #{tpu_custom_call.1} parent=1 // pred_check_branch
      %41 = sbr.rel (0) target = $region17
    $region16: #{tpu_custom_call.1} parent=1 // pred_region
      %43 = dma.done [#allocation4], 256
    $region17: #{tpu_custom_call.1} parent=1 // pred_fallthru
      _
    %44 = vsyncpa [#allocation3], 1
    %45 = vsyncpa [#allocation4], 1

</llo_original>
